<compile_context>
chip_gen: v6e
topology: v6e:2x2x1
jax: 0.10.0
libtpu: 0.0.40
codegen_flags: <defaults>
</compile_context>

<pallas_src>
import math
from functools import partial

import jax
import jax.numpy as jnp
from jax import lax
from jax.experimental import pallas as pl
from jax.experimental.pallas import tpu as pltpu


def _l0_regularization_eval(matrix, beta, zeta, gamma):
    # TODO(synk): the reference `L0Regularization` module is not provided; this is the
    # standard deterministic (eval-mode) hard-concrete gate (Louizos et al. 2018) with
    # `matrix` as the gate location parameter, applied multiplicatively to `matrix`.
    s = jax.nn.sigmoid(matrix) * (zeta - gamma) + gamma
    gate = jnp.clip(s, 0.0, 1.0)
    l0_out = matrix * gate
    l0 = jnp.sum(jax.nn.sigmoid(matrix - beta * math.log(-gamma / zeta)))
    return l0_out, l0


def _block_diag_expand(x):
    """x: (n, w) -> (n, n*w) with out[r, r*w:(r+1)*w] = x[r], zeros elsewhere."""
    n, w = x.shape
    rep = jnp.concatenate([x] * n, axis=1)                      # (n, n*w)
    r = lax.broadcasted_iota(jnp.int32, rep.shape, 0)
    c = lax.broadcasted_iota(jnp.int32, rep.shape, 1)
    keep = (c >= r * w) & (c < r * w + w)
    return jnp.where(keep, rep, jnp.zeros_like(rep))


def _dot_attention_v4_kernel(q_ref, k_ref, v_ref, g_ref, o_ref, *, inv_scale):
    """One (query-feature tile, batch element) grid step.

    q_ref: (TI, D)        query features of this tile
    k_ref: (F, D)         all key features of this batch element
    v_ref: (F, Dv)        all value features of this batch element
    g_ref: (TI*D, F*D)    L0-gated bilinear weights, g[(i,p), (j,q)] = L0Out[i,j,p,q]
    o_ref: (TI, Dv)
    """
    q = q_ref[...].astype(jnp.float32)
    if inv_scale != 1.0:   # fold the 1/sqrt(.) factor into the smallest operand
        q = q * inv_scale
    k = k_ref[...].astype(jnp.float32)

    # Block-diagonal expansions turn the per-feature-pair bilinear form into plain
    # lane-dense 2-D MXU matmuls (the injected zeros are hidden: the kernel is bound
    # by streaming the G tile from HBM, not by MXU flops).
    qbd = _block_diag_expand(q)          # (TI, TI*D)
    kbd = _block_diag_expand(k)          # (F,  F*D)

    # t[r, j*D+q] = sum_p q[r, p] * L0Out[i(r), j, p, q]
    t = lax.dot_general(qbd, g_ref[...].astype(jnp.float32),
                        (((1,), (0,)), ((), ())),
                        preferred_element_type=jnp.float32)      # (TI, F*D)

    # score[r, j] = sum_q t[r, j*D+q] * k[j, q]   == (scoreHat * L0Out).sum((4, 5))
    score = lax.dot_general(t, kbd, (((1,), (1,)), ((), ())),
                            preferred_element_type=jnp.float32)  # (TI, F)

    # softmax over the key-feature axis (last / lane axis); normalization is folded
    # into a single post-scale of the output tile.
    score = score - jnp.max(score, axis=-1, keepdims=True)
    e = jnp.exp(score)                                           # (TI, F)
    denom = jnp.sum(e, axis=-1, keepdims=True)                   # (TI, 1)

    # out[r, :] = (sum_j e[r, j] * v[j, :]) / denom[r]
    out = lax.dot_general(e, v_ref[...].astype(jnp.float32),
                          (((1,), (0,)), ((), ())),
                          preferred_element_type=jnp.float32)    # (TI, Dv)
    o_ref[...] = (out / denom).astype(o_ref.dtype)


def _pick_feature_tile(f, d, itemsize, g_block_budget_bytes):
    """Query-feature tile TI: largest divisor of F (multiple of 8, or F itself, so
    the (8, 128) block constraints hold) whose (TI*D, F*D) G block stays within a
    per-buffer VMEM budget (the pipeline double-buffers it).  Falls back to the
    SMALLEST legal tile (never to F) if nothing fits the budget."""
    def g_bytes(ti):
        return ti * d * f * d * itemsize
    cands = [t for t in range(8, f, 8) if f % t == 0] + [f]
    fitting = [t for t in cands if g_bytes(t) <= g_block_budget_bytes]
    if fitting:
        return max(fitting)
    return min(cands)   # best effort; wrapper raises vmem_limit_bytes to match


@partial(jax.jit, static_argnames=("beta", "zeta", "gamma"))
def dot_attention_v4(query, key, value, matrix, *, beta, zeta, gamma):
    """Pallas TPU forward of DotAttentionV4. Returns (output (B, F, Dv), L0)."""
    b = query.shape[0]
    f, _, d, _ = matrix.shape
    dv = value.shape[-1]
    assert query.shape == (b, 1, f, 1, d), query.shape
    assert key.shape == (b, 1, f, 1, d), key.shape
    assert value.shape == (b, 1, f, 1, dv), value.shape

    # Faithful to the PyTorch code: it divides by sqrt(query.shape[-1]) *after*
    # appending a trailing singleton dim, i.e. by sqrt(1) == 1.
    inv_scale = 1.0 / math.sqrt(1.0)

    # L0 gating of the interaction matrix (elementwise parameter prep, plain JAX;
    # XLA fuses gate + rearrange into one read-matrix / write-G2 pass).
    l0_out, l0 = _l0_regularization_eval(matrix.astype(jnp.float32), beta, zeta, gamma)
    # Pre-arrange as a 2-D operator G2[(i,p),(j,q)]: the kernel never transposes the
    # big operand and its tiles stay lane-dense (last dim F*D, a multiple of 128 or
    # the full extent).
    g2 = jnp.transpose(l0_out, (0, 2, 1, 3)).reshape(f * d, f * d)

    q2 = query.reshape(b, f, d).astype(jnp.float32)
    k2 = key.reshape(b, f, d).astype(jnp.float32)
    v2 = value.reshape(b, f, dv).astype(jnp.float32)

    itemsize = 4  # everything is streamed / computed in f32
    ti = _pick_feature_tile(f, d, itemsize, g_block_budget_bytes=10 * 1024 * 1024)
    assert f % ti == 0

    # VMEM: double-buffered G tile + double-buffered small I/O + headroom for the
    # in-kernel intermediates (qbd/kbd/t).  Clamped to stay portable (v7x = 64 MiB).
    g_tile_bytes = ti * d * f * d * itemsize
    io_bytes = (ti * d + f * d + f * dv + ti * dv) * itemsize
    vmem_limit = int(min(60 * 1024 * 1024,
                         max(32 * 1024 * 1024,
                             2 * (g_tile_bytes + io_bytes) + 8 * 1024 * 1024)))

    # Batch innermost: the resident G2 block keeps the same block index across the
    # batch axis, so each G2 block is fetched from HBM exactly once.
    grid = (f // ti, b)

    kernel = partial(_dot_attention_v4_kernel, inv_scale=inv_scale)

    out = pl.pallas_call(
        kernel,
        out_shape=jax.ShapeDtypeStruct((b, f, dv), query.dtype),
        grid_spec=pltpu.PrefetchScalarGridSpec(
            num_scalar_prefetch=0,
            grid=grid,
            in_specs=[
                pl.BlockSpec((None, ti, d), lambda ii, bb: (bb, ii, 0)),    # query
                pl.BlockSpec((None, f, d), lambda ii, bb: (bb, 0, 0)),      # key
                pl.BlockSpec((None, f, dv), lambda ii, bb: (bb, 0, 0)),     # value
                pl.BlockSpec((ti * d, f * d), lambda ii, bb: (ii, 0)),      # gated G2
            ],
            out_specs=pl.BlockSpec((None, ti, dv), lambda ii, bb: (bb, ii, 0)),
        ),
        compiler_params=pltpu.CompilerParams(
            dimension_semantics=("parallel", "parallel"),
            vmem_limit_bytes=vmem_limit,
        ),
    )(q2, k2, v2, g2)

    return out, l0


if __name__ == "__main__":
    rng = jax.random.PRNGKey(0)
    kq, kk, kv, km = jax.random.split(rng, 4)

    B, F, D, DV = 2, 8, 32, 32
    BETA, ZETA, GAMMA = 2.0 / 3.0, 1.1, -0.1

    query = jax.random.normal(kq, (B, 1, F, 1, D), dtype=jnp.float32)
    key = jax.random.normal(kk, (B, 1, F, 1, D), dtype=jnp.float32)
    value = jax.random.normal(kv, (B, 1, F, 1, DV), dtype=jnp.float32)
    # torch.nn.init.normal_(matrix, mean=0, std=0.001)
    matrix = 0.001 * jax.random.normal(km, (F, F, D, D), dtype=jnp.float32)

    out, l0 = dot_attention_v4(query, key, value, matrix,
                               beta=BETA, zeta=ZETA, gamma=GAMMA)
    out = jax.block_until_ready(out)

    # Pure-JAX reference mirroring the PyTorch forward op-by-op.
    l0_out_ref, l0_ref = _l0_regularization_eval(matrix, BETA, ZETA, GAMMA)
    transb = jnp.transpose(key, (0, 1, 3, 2, 4))[:, :, :, :, None, :]
    q_u = query[:, :, :, :, :, None]
    shape = math.sqrt(q_u.shape[-1])                  # == 1.0, exactly as in the module
    score_hat = jnp.matmul(q_u, transb) / shape
    score = jnp.sum(score_hat * l0_out_ref[None, None], axis=(4, 5))
    score = jnp.squeeze(score)
    if score.ndim == 2:
        score = score[None]
    sm = jax.nn.softmax(score, axis=-1)[:, :, None, :]
    v_p = jnp.transpose(jnp.squeeze(value, axis=1), (0, 2, 1, 3))
    out_ref = jnp.squeeze(jnp.matmul(sm, v_p), axis=-2)

    assert out.shape == (B, F, DV), out.shape
    max_err = float(jnp.max(jnp.abs(out - out_ref)))
    assert jnp.allclose(out, out_ref, atol=1e-5, rtol=1e-4), max_err
    assert jnp.allclose(l0, l0_ref, atol=1e-5, rtol=1e-5)

    print("KERNEL_OK")
</pallas_src>

<mosaic_0001>
module attributes {stable_mosaic.version = 11 : i64} {
  func.func @_dot_attention_v4_kernel(%arg0: i32, %arg1: i32, %arg2: memref<1x8x32xf32, #tpu.memory_space<vmem>>, %arg3: memref<1x8x32xf32, #tpu.memory_space<vmem>>, %arg4: memref<1x8x32xf32, #tpu.memory_space<vmem>>, %arg5: memref<256x256xf32, #tpu.memory_space<vmem>>, %arg6: memref<1x8x32xf32, #tpu.memory_space<vmem>>) attributes {dimension_semantics = [#tpu.dimension_semantics<parallel>, #tpu.dimension_semantics<parallel>], iteration_bounds = array<i64: 1, 2>, scalar_prefetch = 0 : i64, scratch_operands = 0 : i64, tpu.core_type = #tpu.core_type<tc>, window_params = [{transform_indices = @transform_0, window_bounds = array<i64: 1, 8, 32>}, {transform_indices = @transform_1, window_bounds = array<i64: 1, 8, 32>}, {transform_indices = @transform_2, window_bounds = array<i64: 1, 8, 32>}, {transform_indices = @transform_3, window_bounds = array<i64: 256, 256>}, {transform_indices = @transform_4, window_bounds = array<i64: 1, 8, 32>}]} {
    %c0 = arith.constant 0 : index
    %c0_0 = arith.constant 0 : index
    %c0_1 = arith.constant 0 : index
    %0 = vector.load %arg2[%c0, %c0_0, %c0_1] : memref<1x8x32xf32, #tpu.memory_space<vmem>>, vector<1x8x32xf32>
    %1 = vector.shape_cast %0 : vector<1x8x32xf32> to vector<8x32xf32>
    %c0_2 = arith.constant 0 : index
    %c0_3 = arith.constant 0 : index
    %c0_4 = arith.constant 0 : index
    %2 = vector.load %arg3[%c0_2, %c0_3, %c0_4] : memref<1x8x32xf32, #tpu.memory_space<vmem>>, vector<1x8x32xf32>
    %3 = vector.shape_cast %2 : vector<1x8x32xf32> to vector<8x32xf32>
    %4 = tpu.concatenate %1, %1, %1, %1, %1, %1, %1, %1 in 1 : vector<8x32xf32>, vector<8x32xf32>, vector<8x32xf32>, vector<8x32xf32>, vector<8x32xf32>, vector<8x32xf32>, vector<8x32xf32>, vector<8x32xf32> -> vector<8x256xf32>
    %5 = tpu.iota {dimensions = array<i32: 0>} : vector<8x256xi32>
    %6 = tpu.iota {dimensions = array<i32: 1>} : vector<8x256xi32>
    %c32_i32 = arith.constant 32 : i32
    %7 = vector.broadcast %c32_i32 : i32 to vector<8x256xi32>
    %8 = arith.muli %5, %7 : vector<8x256xi32>
    %9 = arith.cmpi sge, %6, %8 : vector<8x256xi32>
    %c32_i32_5 = arith.constant 32 : i32
    %10 = vector.broadcast %c32_i32_5 : i32 to vector<8x256xi32>
    %11 = arith.muli %5, %10 : vector<8x256xi32>
    %c32_i32_6 = arith.constant 32 : i32
    %12 = vector.broadcast %c32_i32_6 : i32 to vector<8x256xi32>
    %13 = arith.addi %11, %12 : vector<8x256xi32>
    %14 = arith.cmpi slt, %6, %13 : vector<8x256xi32>
    %15 = arith.andi %9, %14 : vector<8x256xi1>
    %cst = arith.constant 0.000000e+00 : f32
    %16 = vector.broadcast %cst : f32 to vector<8x256xf32>
    %17 = arith.select %15, %4, %16 : vector<8x256xi1>, vector<8x256xf32>
    %18 = tpu.concatenate %3, %3, %3, %3, %3, %3, %3, %3 in 1 : vector<8x32xf32>, vector<8x32xf32>, vector<8x32xf32>, vector<8x32xf32>, vector<8x32xf32>, vector<8x32xf32>, vector<8x32xf32>, vector<8x32xf32> -> vector<8x256xf32>
    %19 = tpu.iota {dimensions = array<i32: 0>} : vector<8x256xi32>
    %20 = tpu.iota {dimensions = array<i32: 1>} : vector<8x256xi32>
    %c32_i32_7 = arith.constant 32 : i32
    %21 = vector.broadcast %c32_i32_7 : i32 to vector<8x256xi32>
    %22 = arith.muli %19, %21 : vector<8x256xi32>
    %23 = arith.cmpi sge, %20, %22 : vector<8x256xi32>
    %c32_i32_8 = arith.constant 32 : i32
    %24 = vector.broadcast %c32_i32_8 : i32 to vector<8x256xi32>
    %25 = arith.muli %19, %24 : vector<8x256xi32>
    %c32_i32_9 = arith.constant 32 : i32
    %26 = vector.broadcast %c32_i32_9 : i32 to vector<8x256xi32>
    %27 = arith.addi %25, %26 : vector<8x256xi32>
    %28 = arith.cmpi slt, %20, %27 : vector<8x256xi32>
    %29 = arith.andi %23, %28 : vector<8x256xi1>
    %cst_10 = arith.constant 0.000000e+00 : f32
    %30 = vector.broadcast %cst_10 : f32 to vector<8x256xf32>
    %31 = arith.select %29, %18, %30 : vector<8x256xi1>, vector<8x256xf32>
    %c0_11 = arith.constant 0 : index
    %c0_12 = arith.constant 0 : index
    %32 = vector.load %arg5[%c0_11, %c0_12] : memref<256x256xf32, #tpu.memory_space<vmem>>, vector<256x256xf32>
    %cst_13 = arith.constant dense<0.000000e+00> : vector<8x256xf32>
    %33 = tpu.matmul %17, %32, %cst_13 {dimension_numbers = #tpu.dot_dimension_numbers<[1], [0], [0], [1], [0, 0, 1, 1], [], []>} : vector<8x256xf32>, vector<256x256xf32>, vector<8x256xf32> -> vector<8x256xf32>
    %cst_14 = arith.constant dense<0.000000e+00> : vector<8x8xf32>
    %34 = tpu.matmul %33, %31, %cst_14 {dimension_numbers = #tpu.dot_dimension_numbers<[1], [1], [0], [0], [0, 0, 1, 0], [], []>} : vector<8x256xf32>, vector<8x256xf32>, vector<8x8xf32> -> vector<8x8xf32>
    %cst_15 = arith.constant dense<0xFF800000> : vector<8xf32>
    %35 = vector.multi_reduction <maximumf>, %34, %cst_15 [1] : vector<8x8xf32> to vector<8xf32>
    %36 = vector.shape_cast %35 : vector<8xf32> to vector<8x1xf32>
    %37 = vector.broadcast %36 : vector<8x1xf32> to vector<8x8xf32>
    %38 = arith.subf %34, %37 : vector<8x8xf32>
    %39 = math.exp %38 : vector<8x8xf32>
    %cst_16 = arith.constant dense<0.000000e+00> : vector<8xf32>
    %40 = vector.multi_reduction <add>, %39, %cst_16 [1] : vector<8x8xf32> to vector<8xf32>
    %41 = vector.shape_cast %40 : vector<8xf32> to vector<8x1xf32>
    %c0_17 = arith.constant 0 : index
    %c0_18 = arith.constant 0 : index
    %c0_19 = arith.constant 0 : index
    %42 = vector.load %arg4[%c0_17, %c0_18, %c0_19] : memref<1x8x32xf32, #tpu.memory_space<vmem>>, vector<1x8x32xf32>
    %43 = vector.shape_cast %42 : vector<1x8x32xf32> to vector<8x32xf32>
    %cst_20 = arith.constant dense<0.000000e+00> : vector<8x32xf32>
    %44 = tpu.matmul %39, %43, %cst_20 {dimension_numbers = #tpu.dot_dimension_numbers<[1], [0], [0], [1], [0, 0, 1, 1], [], []>} : vector<8x8xf32>, vector<8x32xf32>, vector<8x32xf32> -> vector<8x32xf32>
    %45 = vector.broadcast %41 : vector<8x1xf32> to vector<8x32xf32>
    %46 = arith.divf %44, %45 : vector<8x32xf32>
    %c0_21 = arith.constant 0 : index
    %c0_22 = arith.constant 0 : index
    %c0_23 = arith.constant 0 : index
    %47 = vector.load %arg6[%c0_21, %c0_22, %c0_23] : memref<1x8x32xf32, #tpu.memory_space<vmem>>, vector<1x8x32xf32>
    %48 = vector.shape_cast %47 : vector<1x8x32xf32> to vector<8x32xf32>
    %49 = vector.shape_cast %46 : vector<8x32xf32> to vector<1x8x32xf32>
    tpu.vector_store %arg6[%c0_21, %c0_22, %c0_23], %49 {strides = array<i32>} : memref<1x8x32xf32, #tpu.memory_space<vmem>>, vector<1x8x32xf32>,
    return
  }
  func.func @transform_0(%arg0: i32, %arg1: i32) -> (i32, i32, i32) {
    %c0_i32 = arith.constant 0 : i32
    %c0_i32_0 = arith.constant 0 : i32
    return %arg1, %arg0, %c0_i32 : i32, i32, i32
  }
  func.func @transform_1(%arg0: i32, %arg1: i32) -> (i32, i32, i32) {
    %c0_i32 = arith.constant 0 : i32
    %c0_i32_0 = arith.constant 0 : i32
    %c0_i32_1 = arith.constant 0 : i32
    return %arg1, %c0_i32, %c0_i32_0 : i32, i32, i32
  }
  func.func @transform_2(%arg0: i32, %arg1: i32) -> (i32, i32, i32) {
    %c0_i32 = arith.constant 0 : i32
    %c0_i32_0 = arith.constant 0 : i32
    %c0_i32_1 = arith.constant 0 : i32
    return %arg1, %c0_i32, %c0_i32_0 : i32, i32, i32
  }
  func.func @transform_3(%arg0: i32, %arg1: i32) -> (i32, i32) {
    %c0_i32 = arith.constant 0 : i32
    %c0_i32_0 = arith.constant 0 : i32
    return %arg0, %c0_i32 : i32, i32
  }
  func.func @transform_4(%arg0: i32, %arg1: i32) -> (i32, i32, i32) {
    %c0_i32 = arith.constant 0 : i32
    %c0_i32_0 = arith.constant 0 : i32
    return %arg1, %arg0, %c0_i32 : i32, i32, i32
  }
}

</mosaic_0001>

<llo_original>
// kernel: dot_attention_v4.1
$region0: #{dot_attention_v4.1}
  #allocation0 [shape = 'u32[]', space=smem, size = 0x4, offset = 0x4, fixed_abs, tag = 'smem constant byte address 0x4 - core index']
  #allocation1 [shape = 'u32[144,128]{1,0:T(1,128)}', space=vmem, size = 0x12000, scoped, tag = 'internal scratch']
  %s0 = inlined_call_operand.vmem [shape: f32[2,8,32], index: 0, kind: input, shape index: {}]
  %s1 = inlined_call_operand.vmem [shape: f32[2,8,32], index: 1, kind: input, shape index: {}]
  %s2 = inlined_call_operand.vmem [shape: f32[2,8,32], index: 2, kind: input, shape index: {}]
  %s3 = inlined_call_operand.vmem [shape: f32[256,256], index: 3, kind: input, shape index: {}]
  %s4 = inlined_call_operand.hbm [shape: f32[2,8,32], index: 4, kind: output, shape index: {}]
  %s5 = sld [smem:[#allocation0]]
  $region49: #{dot_attention_v4.1} parent=0
    _
  %s7 = ssub.s32 1, %s5
  %s8 = scalar_select 0, %s7, %s5
  $region1: #{dot_attention_v4.1} parent=0
    #allocation2 [shape = 'u8[8192]{0}', space=vmem, size = 0x2000, scoped, tag = 'output window, operand 0']
    #allocation3 [shape = 's32[2]{0}', space=sflag, size = 0x8, scoped, tag = 'scoped memory for dot_attention_v4.1']
    %9 = vsyncpa [#allocation3], 0
    %s10 = scalar_lea.sflag [#allocation3], 1
    %11 = vsyncpa %s10, 0
    loop: start=0, step=1, limit=4
    $region2: #{dot_attention_v4.1} parent=1 // loop_pre_header
      _
    $region3: #{dot_attention_v4.1} parent=1 // loop_header
      %s13 = sphi 0, %s17
      %p14 = scmp.ge.s32.totalorder %s13, 4
      %s20 = sphi 0, %s32
      %s21 = sphi 0, %s28
      %s22 = sphi 0, %s20
      %s23 = sphi 0, %s21
      %s24 = sphi 0, %s22
      %s25 = sphi 0, %s23
      %s37 = sphi 0, %s39
      %s40 = sphi 0, %s37
      %s41 = sphi 0, %s40
      %s57 = sphi 0, %s41
      %s63 = sphi 0, %s65
      %s66 = sphi 0, %s63
      %s67 = sphi 0, %s66
      %s83 = sphi 0, %s67
      %s89 = sphi 0, %s91
      %s92 = sphi 0, %s89
      %s93 = sphi 0, %s92
      %s109 = sphi 0, %s93
      %s115 = sphi 0, %s117
      %s118 = sphi 0, %s115
      %s119 = sphi 0, %s118
      %s135 = sphi 0, %s119
      %s143 = sphi 0, %s145
      %s146 = sphi 0, %s143
      %s147 = sphi 0, %s146
      %s163 = sphi 0, %s147
    $region4: #{dot_attention_v4.1} parent=1 // loop_header_branch
      %16 = sbr.rel (%p14) target = $region8
    $region5: #{dot_attention_v4.1} parent=1 // loop_body
      %s18 = ssub.s32 %s13, 1
      %s19 = ssub.s32 %s13, 2
      %s26 = sadd.s32 1, %s21
      %p27 = scmp.ge.s32.totalorder %s26, 2
      %s28 = scalar_select %p27, 0, %s26
      %s29 = sadd.s32 1, %s20
      %s30 = scalar_select %p27, %s29, %s20
      %p31 = scmp.ge.s32.totalorder %s30, 1
      %s32 = scalar_select %p31, 0, %s30
      %s33 = ssub.s32 %s21, %s28
      %s34 = ssub.s32 %s20, %s32
      %s35 = sor.u32 %s33, %s34
      %p36 = scmp.eq.s32.totalorder %s35, 0
      %s38 = sadd.s32 %s37, 1
      %s39 = scalar_select %p36, %s37, %s38
      %p42 = pneg %p36
      %p43 = scmp.eq.s32.totalorder %s13, 1
      %p44 = por %p42, %p43
      %p45 = scmp.ne.s32.totalorder %s37, %s40
      %p46 = scmp.eq.s32.totalorder %s13, 0
      %p47 = por %p45, %p46
      %p48 = scmp.ne.s32.totalorder %s37, %s40
      %p49 = scmp.eq.s32.totalorder %s18, 1
      %p50 = por %p48, %p49
      %p51 = scmp.ne.s32.totalorder %s40, %s41
      %p52 = scmp.eq.s32.totalorder %s18, 0
      %p53 = por %p51, %p52
      %p54 = scmp.ne.s32.totalorder %s40, %s41
      %p55 = scmp.eq.s32.totalorder %s19, 1
      %p56 = por %p54, %p55
      %p58 = scmp.ne.s32.totalorder %s41, %s57
      %p59 = scmp.eq.s32.totalorder %s19, 0
      %p60 = por %p58, %p59
      %s61 = ssub.s32 %s21, %s28
      %p62 = scmp.eq.s32.totalorder %s61, 0
      %s64 = sadd.s32 %s63, 1
      %s65 = scalar_select %p62, %s63, %s64
      %p68 = pneg %p62
      %p69 = scmp.eq.s32.totalorder %s13, 1
      %p70 = por %p68, %p69
      %p71 = scmp.ne.s32.totalorder %s63, %s66
      %p72 = scmp.eq.s32.totalorder %s13, 0
      %p73 = por %p71, %p72
      %p74 = scmp.ne.s32.totalorder %s63, %s66
      %p75 = scmp.eq.s32.totalorder %s18, 1
      %p76 = por %p74, %p75
      %p77 = scmp.ne.s32.totalorder %s66, %s67
      %p78 = scmp.eq.s32.totalorder %s18, 0
      %p79 = por %p77, %p78
      %p80 = scmp.ne.s32.totalorder %s66, %s67
      %p81 = scmp.eq.s32.totalorder %s19, 1
      %p82 = por %p80, %p81
      %p84 = scmp.ne.s32.totalorder %s67, %s83
      %p85 = scmp.eq.s32.totalorder %s19, 0
      %p86 = por %p84, %p85
      %s87 = ssub.s32 %s21, %s28
      %p88 = scmp.eq.s32.totalorder %s87, 0
      %s90 = sadd.s32 %s89, 1
      %s91 = scalar_select %p88, %s89, %s90
      %p94 = pneg %p88
      %p95 = scmp.eq.s32.totalorder %s13, 1
      %p96 = por %p94, %p95
      %p97 = scmp.ne.s32.totalorder %s89, %s92
      %p98 = scmp.eq.s32.totalorder %s13, 0
      %p99 = por %p97, %p98
      %p100 = scmp.ne.s32.totalorder %s89, %s92
      %p101 = scmp.eq.s32.totalorder %s18, 1
      %p102 = por %p100, %p101
      %p103 = scmp.ne.s32.totalorder %s92, %s93
      %p104 = scmp.eq.s32.totalorder %s18, 0
      %p105 = por %p103, %p104
      %p106 = scmp.ne.s32.totalorder %s92, %s93
      %p107 = scmp.eq.s32.totalorder %s19, 1
      %p108 = por %p106, %p107
      %p110 = scmp.ne.s32.totalorder %s93, %s109
      %p111 = scmp.eq.s32.totalorder %s19, 0
      %p112 = por %p110, %p111
      %s113 = ssub.s32 %s20, %s32
      %p114 = scmp.eq.s32.totalorder %s113, 0
      %s116 = sadd.s32 %s115, 1
      %s117 = scalar_select %p114, %s115, %s116
      %p120 = pneg %p114
      %p121 = scmp.eq.s32.totalorder %s13, 1
      %p122 = por %p120, %p121
      %p123 = scmp.ne.s32.totalorder %s115, %s118
      %p124 = scmp.eq.s32.totalorder %s13, 0
      %p125 = por %p123, %p124
      %p126 = scmp.ne.s32.totalorder %s115, %s118
      %p127 = scmp.eq.s32.totalorder %s18, 1
      %p128 = por %p126, %p127
      %p129 = scmp.ne.s32.totalorder %s118, %s119
      %p130 = scmp.eq.s32.totalorder %s18, 0
      %p131 = por %p129, %p130
      %p132 = scmp.ne.s32.totalorder %s118, %s119
      %p133 = scmp.eq.s32.totalorder %s19, 1
      %p134 = por %p132, %p133
      %p136 = scmp.ne.s32.totalorder %s119, %s135
      %p137 = scmp.eq.s32.totalorder %s19, 0
      %p138 = por %p136, %p137
      %s139 = ssub.s32 %s21, %s28
      %s140 = ssub.s32 %s20, %s32
      %s141 = sor.u32 %s139, %s140
      %p142 = scmp.eq.s32.totalorder %s141, 0
      %s144 = sadd.s32 %s143, 1
      %s145 = scalar_select %p142, %s143, %s144
      %p148 = pneg %p142
      %p149 = scmp.eq.s32.totalorder %s13, 1
      %p150 = por %p148, %p149
      %p151 = scmp.ne.s32.totalorder %s143, %s146
      %p152 = scmp.eq.s32.totalorder %s13, 0
      %p153 = por %p151, %p152
      %p154 = scmp.ne.s32.totalorder %s143, %s146
      %p155 = scmp.eq.s32.totalorder %s18, 1
      %p156 = por %p154, %p155
      %p157 = scmp.ne.s32.totalorder %s146, %s147
      %p158 = scmp.eq.s32.totalorder %s18, 0
      %p159 = por %p157, %p158
      %p160 = scmp.ne.s32.totalorder %s146, %s147
      %p161 = scmp.eq.s32.totalorder %s19, 1
      %p162 = por %p160, %p161
      %p164 = scmp.ne.s32.totalorder %s147, %s163
      %p165 = scmp.eq.s32.totalorder %s19, 0
      %p166 = por %p164, %p165
      %p167 = scmp.le.s32.totalorder 1, %s13
      %p168 = scmp.lt.s32.totalorder %s13, 3
      %p169 = pnand %p167, %p168
      %p170 = pneg %p169
      // Predicated region
      $region9: #{dot_attention_v4.1} parent=5 // pred_check
        _
      $region10: #{dot_attention_v4.1} parent=5 // pred_check_branch
        %172 = sbr.rel (%p169) target = $region12
      $region11: #{dot_attention_v4.1} parent=5 // pred_region
        %s173 = ssub.s32 %s13, 1
        // Predicated region
        $region13: #{dot_attention_v4.1} parent=11 // pred_check
          %p174 = pneg %p131
        $region14: #{dot_attention_v4.1} parent=11 // pred_check_branch
          %176 = sbr.rel (%p174) target = $region16
        $region15: #{dot_attention_v4.1} parent=11 // pred_region
          %s177 = smul.u32 32, %s22
          %p178 = scmp.lt.s32.totalorder %s177, 31
          %s179 = scalar_select %p178, %s177, 31
          %s180 = smul.addr %s179, 2
          %s181 = smul.addr %s180, 8
          %s182 = scalar_lea.vmem %s3, %s181
          %s183 = smul.u32 32, %s22
        $region16: #{dot_attention_v4.1} parent=11 // pred_fallthru
          _
      $region12: #{dot_attention_v4.1} parent=5 // pred_fallthru
        _
      %p184 = scmp.lt.s32.totalorder %s13, 2
      // Predicated region
      $region17: #{dot_attention_v4.1} parent=5 // pred_check
        %p185 = pneg %p184
      $region18: #{dot_attention_v4.1} parent=5 // pred_check_branch
        %187 = sbr.rel (%p185) target = $region20
      $region19: #{dot_attention_v4.1} parent=5 // pred_region
        // Predicated region
        $region21: #{dot_attention_v4.1} parent=19 // pred_check
          %p188 = pneg %p47
        $region22: #{dot_attention_v4.1} parent=19 // pred_check_branch
          %190 = sbr.rel (%p188) target = $region24
        $region23: #{dot_attention_v4.1} parent=19 // pred_region
          %p191 = scmp.lt.s32.totalorder %s21, 1
          %s192 = scalar_select %p191, %s21, 1
          %p193 = scmp.lt.s32.totalorder %s20, 0
          %s194 = scalar_select %p193, %s20, 0
          %s195 = sadd.s32 %s194, %s192
          %s196 = smul.addr %s195, 8
          %s197 = scalar_lea.vmem %s0, %s196
        $region24: #{dot_attention_v4.1} parent=19 // pred_fallthru
          _
        // Predicated region
        $region25: #{dot_attention_v4.1} parent=19 // pred_check
          %p198 = pneg %p73
        $region26: #{dot_attention_v4.1} parent=19 // pred_check_branch
          %200 = sbr.rel (%p198) target = $region28
        $region27: #{dot_attention_v4.1} parent=19 // pred_region
          %p201 = scmp.lt.s32.totalorder %s21, 1
          %s202 = scalar_select %p201, %s21, 1
          %s203 = smul.addr %s202, 8
          %s204 = scalar_lea.vmem %s1, %s203
        $region28: #{dot_attention_v4.1} parent=19 // pred_fallthru
          _
        // Predicated region
        $region29: #{dot_attention_v4.1} parent=19 // pred_check
          %p205 = pneg %p99
        $region30: #{dot_attention_v4.1} parent=19 // pred_check_branch
          %207 = sbr.rel (%p205) target = $region32
        $region31: #{dot_attention_v4.1} parent=19 // pred_region
          %p208 = scmp.lt.s32.totalorder %s21, 1
          %s209 = scalar_select %p208, %s21, 1
          %s210 = smul.addr %s209, 8
          %s211 = scalar_lea.vmem %s2, %s210
        $region32: #{dot_attention_v4.1} parent=19 // pred_fallthru
          _
      $region20: #{dot_attention_v4.1} parent=5 // pred_fallthru
        _
      %p212 = scmp.le.s32.totalorder 1, %s13
      %p213 = scmp.lt.s32.totalorder %s13, 3
      %p214 = pnand %p212, %p213
      %p215 = pneg %p214
      // Predicated region
      $region33: #{dot_attention_v4.1} parent=5 // pred_check
        _
      $region34: #{dot_attention_v4.1} parent=5 // pred_check_branch
        %217 = sbr.rel (%p214) target = $region36
      $region35: #{dot_attention_v4.1} parent=5 // pred_region
        %s218 = ssub.s32 %s13, 1
        %p219 = scmp.lt.s32.totalorder %s23, 1
        %s220 = scalar_select %p219, %s23, 1
        %p221 = scmp.lt.s32.totalorder %s22, 0
        %s222 = scalar_select %p221, %s22, 0
        %s223 = sadd.s32 %s222, %s220
        %s224 = smul.addr %s223, 8
        %s225 = scalar_lea.vmem %s0, %s224
        %p226 = pneg %p53
        %p227 = pneg %p50
        %p228 = scmp.lt.s32.totalorder %s23, 1
        %s229 = scalar_select %p228, %s23, 1
        %s230 = smul.addr %s229, 8
        %s231 = scalar_lea.vmem %s1, %s230
        %p232 = pneg %p79
        %p233 = pneg %p76
        %p234 = scmp.lt.s32.totalorder %s23, 1
        %s235 = scalar_select %p234, %s23, 1
        %s236 = smul.addr %s235, 8
        %s237 = scalar_lea.vmem %s2, %s236
        %p238 = pneg %p105
        %p239 = pneg %p102
        %s240 = smul.u32 32, %s22
        %p241 = scmp.lt.s32.totalorder %s240, 31
        %s242 = scalar_select %p241, %s240, 31
        %s243 = smul.addr %s242, 2
        %s244 = smul.addr %s243, 8
        %s245 = scalar_lea.vmem %s3, %s244
        %p246 = pneg %p131
        %p247 = pneg %p128
        %p248 = pneg %p159
        %p249 = pneg %p156
        %s250 = sand.u32 %s146, 1
        %s251 = scalar_lea.sflag [#allocation3], %s250
        %s252 = sand.u32 %s146, 1
        %s253 = smul.addr %s252, 8
        %s254 = scalar_lea.vmem [#allocation2], %s253
        %p255 = scmp.lt.s32.totalorder %s23, 1
        %s256 = scalar_select %p255, %s23, 1
        %p257 = scmp.lt.s32.totalorder %s22, 0
        %s258 = scalar_select %p257, %s22, 0
        %s259 = sadd.s32 %s258, %s256
        %s260 = smul.addr %s259, 8
        %s261 = scalar_lea.vmem %s0, %s260
        %p262 = scmp.lt.s32.totalorder %s23, 1
        %s263 = scalar_select %p262, %s23, 1
        %s264 = smul.addr %s263, 8
        %s265 = scalar_lea.vmem %s1, %s264
        %p266 = scmp.lt.s32.totalorder %s23, 1
        %s267 = scalar_select %p266, %s23, 1
        %s268 = smul.addr %s267, 8
        %s269 = scalar_lea.vmem %s2, %s268
        %s270 = smul.u32 32, %s22
        %p271 = scmp.lt.s32.totalorder %s270, 31
        %s272 = scalar_select %p271, %s270, 31
        %s273 = smul.addr %s272, 2
        %s274 = smul.addr %s273, 8
        %s275 = scalar_lea.vmem %s3, %s274
        %s276 = smul.u32 32, %s22
        %v277 = vld [vmem:[%s261] sm:$0xff]
        %v278 = vld [vmem:[%s265] sm:$0xff]
        %280 = vrot.lane.b32.xlu0 %v277, 32
        %v281 = vpop.permute.xlu0 %280
        %283 = vrot.lane.b32.xlu0 %v277, 64
        %v284 = vpop.permute.xlu0 %283
        %286 = vrot.lane.b32.xlu0 %v277, 96
        %v287 = vpop.permute.xlu0 %286
        %vm289 = vcmask 261120
        %v290 = vsel %vm289, %v277, %v281
        %vm291 = vcmask 523264
        %v292 = vsel %vm291, %v290, %v284
        %vm293 = vcmask 785408
        %v294 = vsel %vm293, %v292, %v287
        %v295 = vlaneseq
        %v296 = vshrl.u32 %v295, 7
        %v297 = vlaneseq
        %v298 = vand.u32 %v297, 127
        %v299 = vadd.s32 %v298, 128
        %v300 = vmul.u32 %v296, 32
        %vm301 = vcmp.ge.s32.totalorder %v298, %v300
        %vm302 = vcmp.ge.s32.totalorder %v299, %v300
        %v303 = vadd.s32 %v300, 32
        %vm304 = vcmp.lt.s32.totalorder %v298, %v303
        %vm305 = vcmp.lt.s32.totalorder %v299, %v303
        %vm306 = vmand %vm301, %vm304
        %vm307 = vmand %vm302, %vm305
        %v308 = vsel %vm306, %v294, 0.0
        %v309 = vsel %vm307, %v294, 0.0
        %311 = vrot.lane.b32.xlu0 %v278, 32
        %v312 = vpop.permute.xlu0 %311
        %314 = vrot.lane.b32.xlu0 %v278, 64
        %v315 = vpop.permute.xlu0 %314
        %317 = vrot.lane.b32.xlu0 %v278, 96
        %v318 = vpop.permute.xlu0 %317
        %v320 = vsel %vm289, %v278, %v312
        %v321 = vsel %vm291, %v320, %v315
        %v322 = vsel %vm293, %v321, %v318
        %v323 = vsel %vm306, %v322, 0.0
        %v324 = vsel %vm307, %v322, 0.0
        %v325 = vld [vmem:[%s275] sm:$0xff]
        %v326 = vld [vmem:[%s275 + $0x8] sm:$0xff]
        %v327 = vld [vmem:[%s275 + $0x10] sm:$0xff]
        %v328 = vld [vmem:[%s275 + $0x18] sm:$0xff]
        %v329 = vld [vmem:[%s275 + $0x20] sm:$0xff]
        %v330 = vld [vmem:[%s275 + $0x28] sm:$0xff]
        %v331 = vld [vmem:[%s275 + $0x30] sm:$0xff]
        %v332 = vld [vmem:[%s275 + $0x38] sm:$0xff]
        %v333 = vld [vmem:[%s275 + $0x40] sm:$0xff]
        %v334 = vld [vmem:[%s275 + $0x48] sm:$0xff]
        %v335 = vld [vmem:[%s275 + $0x50] sm:$0xff]
        %v336 = vld [vmem:[%s275 + $0x58] sm:$0xff]
        %v337 = vld [vmem:[%s275 + $0x60] sm:$0xff]
        %v338 = vld [vmem:[%s275 + $0x68] sm:$0xff]
        %v339 = vld [vmem:[%s275 + $0x70] sm:$0xff]
        %v340 = vld [vmem:[%s275 + $0x78] sm:$0xff]
        %v341 = vld [vmem:[%s275 + $0x80] sm:$0xff]
        %v342 = vld [vmem:[%s275 + $0x88] sm:$0xff]
        %v343 = vld [vmem:[%s275 + $0x90] sm:$0xff]
        %v344 = vld [vmem:[%s275 + $0x98] sm:$0xff]
        %v345 = vld [vmem:[%s275 + $0xa0] sm:$0xff]
        %v346 = vld [vmem:[%s275 + $0xa8] sm:$0xff]
        %v347 = vld [vmem:[%s275 + $0xb0] sm:$0xff]
        %v348 = vld [vmem:[%s275 + $0xb8] sm:$0xff]
        %v349 = vld [vmem:[%s275 + $0xc0] sm:$0xff]
        %v350 = vld [vmem:[%s275 + $0xc8] sm:$0xff]
        %v351 = vld [vmem:[%s275 + $0xd0] sm:$0xff]
        %v352 = vld [vmem:[%s275 + $0xd8] sm:$0xff]
        %v353 = vld [vmem:[%s275 + $0xe0] sm:$0xff]
        %v354 = vld [vmem:[%s275 + $0xe8] sm:$0xff]
        %v355 = vld [vmem:[%s275 + $0xf0] sm:$0xff]
        %v356 = vld [vmem:[%s275 + $0xf8] sm:$0xff]
        %v357 = vld [vmem:[%s275 + $0x100] sm:$0xff]
        %v358 = vld [vmem:[%s275 + $0x108] sm:$0xff]
        %v359 = vld [vmem:[%s275 + $0x110] sm:$0xff]
        %v360 = vld [vmem:[%s275 + $0x118] sm:$0xff]
        %v361 = vld [vmem:[%s275 + $0x120] sm:$0xff]
        %v362 = vld [vmem:[%s275 + $0x128] sm:$0xff]
        %v363 = vld [vmem:[%s275 + $0x130] sm:$0xff]
        %v364 = vld [vmem:[%s275 + $0x138] sm:$0xff]
        %v365 = vld [vmem:[%s275 + $0x140] sm:$0xff]
        %v366 = vld [vmem:[%s275 + $0x148] sm:$0xff]
        %v367 = vld [vmem:[%s275 + $0x150] sm:$0xff]
        %v368 = vld [vmem:[%s275 + $0x158] sm:$0xff]
        %v369 = vld [vmem:[%s275 + $0x160] sm:$0xff]
        %v370 = vld [vmem:[%s275 + $0x168] sm:$0xff]
        %v371 = vld [vmem:[%s275 + $0x170] sm:$0xff]
        %v372 = vld [vmem:[%s275 + $0x178] sm:$0xff]
        %v373 = vld [vmem:[%s275 + $0x180] sm:$0xff]
        %v374 = vld [vmem:[%s275 + $0x188] sm:$0xff]
        %v375 = vld [vmem:[%s275 + $0x190] sm:$0xff]
        %v376 = vld [vmem:[%s275 + $0x198] sm:$0xff]
        %v377 = vld [vmem:[%s275 + $0x1a0] sm:$0xff]
        %v378 = vld [vmem:[%s275 + $0x1a8] sm:$0xff]
        %v379 = vld [vmem:[%s275 + $0x1b0] sm:$0xff]
        %v380 = vld [vmem:[%s275 + $0x1b8] sm:$0xff]
        %v381 = vld [vmem:[%s275 + $0x1c0] sm:$0xff]
        %v382 = vld [vmem:[%s275 + $0x1c8] sm:$0xff]
        %v383 = vld [vmem:[%s275 + $0x1d0] sm:$0xff]
        %v384 = vld [vmem:[%s275 + $0x1d8] sm:$0xff]
        %v385 = vld [vmem:[%s275 + $0x1e0] sm:$0xff]
        %v386 = vld [vmem:[%s275 + $0x1e8] sm:$0xff]
        %v387 = vld [vmem:[%s275 + $0x1f0] sm:$0xff]
        %v388 = vld [vmem:[%s275 + $0x1f8] sm:$0xff]
        %389 = vmatprep.subr.mxu0 %v356
        %390 = vmatpush1.msra.mxu0 %v355
        %391 = vmatprep.subr.mxu0 %v354
        %392 = vmatpush1.msra.mxu0 %v353
        %393 = vmatprep.subr.mxu0 %v352
        %394 = vmatpush1.msra.mxu0 %v351
        %395 = vmatprep.subr.mxu0 %v350
        %396 = vmatpush1.msra.mxu0 %v349
        %397 = vmatprep.subr.mxu0 %v348
        %398 = vmatpush1.msra.mxu0 %v347
        %399 = vmatprep.subr.mxu0 %v346
        %400 = vmatpush1.msra.mxu0 %v345
        %401 = vmatprep.subr.mxu0 %v344
        %402 = vmatpush1.msra.mxu0 %v343
        %403 = vmatprep.subr.mxu0 %v342
        %404 = vmatpush1.msra.mxu0 %v341
        %405 = vmatprep.subr.mxu0 %v340
        %406 = vmatpush1.msra.mxu0 %v339
        %407 = vmatprep.subr.mxu0 %v338
        %408 = vmatpush1.msra.mxu0 %v337
        %409 = vmatprep.subr.mxu0 %v336
        %410 = vmatpush1.msra.mxu0 %v335
        %411 = vmatprep.subr.mxu0 %v334
        %412 = vmatpush1.msra.mxu0 %v333
        %413 = vmatprep.subr.mxu0 %v332
        %414 = vmatpush1.msra.mxu0 %v331
        %415 = vmatprep.subr.mxu0 %v330
        %416 = vmatpush1.msra.mxu0 %v329
        %417 = vmatprep.subr.mxu0 %v328
        %418 = vmatpush1.msra.mxu0 %v327
        %419 = vmatprep.subr.mxu0 %v326
        %420 = vmatpush1.msra.mxu0 %v325
        %421 = vmatprep.subr.mxu0 %v388
        %422 = vmatpush2.msra.mxu0 %v387
        %423 = vmatprep.subr.mxu0 %v386
        %424 = vmatpush2.msra.mxu0 %v385
        %425 = vmatprep.subr.mxu0 %v384
        %426 = vmatpush2.msra.mxu0 %v383
        %427 = vmatprep.subr.mxu0 %v382
        %428 = vmatpush2.msra.mxu0 %v381
        %429 = vmatprep.subr.mxu0 %v380
        %430 = vmatpush2.msra.mxu0 %v379
        %431 = vmatprep.subr.mxu0 %v378
        %432 = vmatpush2.msra.mxu0 %v377
        %433 = vmatprep.subr.mxu0 %v376
        %434 = vmatpush2.msra.mxu0 %v375
        %435 = vmatprep.subr.mxu0 %v374
        %436 = vmatpush2.msra.mxu0 %v373
        %437 = vmatprep.subr.mxu0 %v372
        %438 = vmatpush2.msra.mxu0 %v371
        %439 = vmatprep.subr.mxu0 %v370
        %440 = vmatpush2.msra.mxu0 %v369
        %441 = vmatprep.subr.mxu0 %v368
        %442 = vmatpush2.msra.mxu0 %v367
        %443 = vmatprep.subr.mxu0 %v366
        %444 = vmatpush2.msra.mxu0 %v365
        %445 = vmatprep.subr.mxu0 %v364
        %446 = vmatpush2.msra.mxu0 %v363
        %447 = vmatprep.subr.mxu0 %v362
        %448 = vmatpush2.msra.mxu0 %v361
        %449 = vmatprep.subr.mxu0 %v360
        %450 = vmatpush2.msra.mxu0 %v359
        %451 = vmatprep.subr.mxu0 %v358
        %452 = vmatpush2.msra.mxu0 %v357
        %453 = vmatprep.mubr.f32.mxu0 %v309
        %454 = vmatmul.mubr.f32.gmra.mxu0 %v308
        %v455 = vpop.f32.mrf.mxu0
        %v456 = vadd.f32 0.0, %v455
        %v457 = vpop.f32.mrf.mxu0
        %v458 = vadd.f32 0.0, %v457
        %459 = vdwg.mxu0
        %460 = vmatprep.subr.mxu0 0.0
        %461 = vmatpush1.xpose.msra.mxu0 0.0
        %462 = vmatprep.subr.mxu0 0.0
        %463 = vmatpush1.xpose.msra.mxu0 0.0
        %464 = vmatprep.subr.mxu0 0.0
        %465 = vmatpush1.xpose.msra.mxu0 0.0
        %466 = vmatprep.subr.mxu0 0.0
        %467 = vmatpush1.xpose.msra.mxu0 0.0
        %468 = vmatprep.subr.mxu0 0.0
        %469 = vmatpush1.xpose.msra.mxu0 0.0
        %470 = vmatprep.subr.mxu0 0.0
        %471 = vmatpush1.xpose.msra.mxu0 0.0
        %472 = vmatprep.subr.mxu0 0.0
        %473 = vmatpush1.xpose.msra.mxu0 0.0
        %474 = vmatprep.subr.mxu0 0.0
        %475 = vmatpush1.xpose.msra.mxu0 0.0
        %476 = vmatprep.subr.mxu0 0.0
        %477 = vmatpush1.xpose.msra.mxu0 0.0
        %478 = vmatprep.subr.mxu0 0.0
        %479 = vmatpush1.xpose.msra.mxu0 0.0
        %480 = vmatprep.subr.mxu0 0.0
        %481 = vmatpush1.xpose.msra.mxu0 0.0
        %482 = vmatprep.subr.mxu0 0.0
        %483 = vmatpush1.xpose.msra.mxu0 0.0
        %484 = vmatprep.subr.mxu0 0.0
        %485 = vmatpush1.xpose.msra.mxu0 0.0
        %486 = vmatprep.subr.mxu0 0.0
        %487 = vmatpush1.xpose.msra.mxu0 0.0
        %488 = vmatprep.subr.mxu0 0.0
        %489 = vmatpush1.xpose.msra.mxu0 0.0
        %490 = vmatprep.subr.mxu0 %v324
        %491 = vmatpush1.xpose.msra.mxu0 %v323
        %492 = vmatprep.subr.mxu0 0.0
        %493 = vmatpush2.xpose.msra.mxu0 0.0
        %494 = vmatprep.subr.mxu0 0.0
        %495 = vmatpush2.xpose.msra.mxu0 0.0
        %496 = vmatprep.subr.mxu0 0.0
        %497 = vmatpush2.xpose.msra.mxu0 0.0
        %498 = vmatprep.subr.mxu0 0.0
        %499 = vmatpush2.xpose.msra.mxu0 0.0
        %500 = vmatprep.subr.mxu0 0.0
        %501 = vmatpush2.xpose.msra.mxu0 0.0
        %502 = vmatprep.subr.mxu0 0.0
        %503 = vmatpush2.xpose.msra.mxu0 0.0
        %504 = vmatprep.subr.mxu0 0.0
        %505 = vmatpush2.xpose.msra.mxu0 0.0
        %506 = vmatprep.subr.mxu0 0.0
        %507 = vmatpush2.xpose.msra.mxu0 0.0
        %508 = vmatprep.subr.mxu0 0.0
        %509 = vmatpush2.xpose.msra.mxu0 0.0
        %510 = vmatprep.subr.mxu0 0.0
        %511 = vmatpush2.xpose.msra.mxu0 0.0
        %512 = vmatprep.subr.mxu0 0.0
        %513 = vmatpush2.xpose.msra.mxu0 0.0
        %514 = vmatprep.subr.mxu0 0.0
        %515 = vmatpush2.xpose.msra.mxu0 0.0
        %516 = vmatprep.subr.mxu0 0.0
        %517 = vmatpush2.xpose.msra.mxu0 0.0
        %518 = vmatprep.subr.mxu0 0.0
        %519 = vmatpush2.xpose.msra.mxu0 0.0
        %520 = vmatprep.subr.mxu0 0.0
        %521 = vmatpush2.xpose.msra.mxu0 0.0
        %522 = vmatprep.subr.mxu0 0.0
        %523 = vmatpush2.xpose.msra.mxu0 0.0
        %524 = vmatprep.mubr.f32.mxu0 %v458
        %525 = vmatmul.mubr.f32.gmra.mxu0 %v456
        %v526 = vpop.f32.mrf.mxu0
        %v527 = vadd.f32 0.0, %v526
        %v528 = vpop.f32.mrf.mxu0
        %529 = vdwg.mxu0
        %vm530 = vcmask 64512
        %v531 = vsel %vm530, %v527, -inf
        %532 = vmax.xlane.f32.xlu0 %v531
        %v533 = vpop.xlane.xlu0 %532
        %v534 = vsub.f32 %v527, %v533
        %v535 = vmul.f32 %v534, 1.442695
        %v536 = vpow.pop %v535
        %v537 = vsel %vm530, %v536, 0.0
        %538 = vadd.xlane.f32.xlu0 %v537
        %v539 = vpop.xlane.xlu0 %538
        %v540 = vld [vmem:[%s269] sm:$0xff]
        %v542 = vsel %vm530, %v536, 0
        %544 = vmatprep.subr.mxu0 0.0
        %545 = vmatpush1.msra.mxu0 0.0
        %546 = vmatprep.subr.mxu0 0.0
        %547 = vmatpush1.msra.mxu0 0.0
        %548 = vmatprep.subr.mxu0 0.0
        %549 = vmatpush1.msra.mxu0 0.0
        %550 = vmatprep.subr.mxu0 0.0
        %551 = vmatpush1.msra.mxu0 0.0
        %552 = vmatprep.subr.mxu0 0.0
        %553 = vmatpush1.msra.mxu0 0.0
        %554 = vmatprep.subr.mxu0 0.0
        %555 = vmatpush1.msra.mxu0 0.0
        %556 = vmatprep.subr.mxu0 0.0
        %557 = vmatpush1.msra.mxu0 0.0
        %558 = vmatprep.subr.mxu0 0.0
        %559 = vmatpush1.msra.mxu0 0.0
        %560 = vmatprep.subr.mxu0 0.0
        %561 = vmatpush1.msra.mxu0 0.0
        %562 = vmatprep.subr.mxu0 0.0
        %563 = vmatpush1.msra.mxu0 0.0
        %564 = vmatprep.subr.mxu0 0.0
        %565 = vmatpush1.msra.mxu0 0.0
        %566 = vmatprep.subr.mxu0 0.0
        %567 = vmatpush1.msra.mxu0 0.0
        %568 = vmatprep.subr.mxu0 0.0
        %569 = vmatpush1.msra.mxu0 0.0
        %570 = vmatprep.subr.mxu0 0.0
        %571 = vmatpush1.msra.mxu0 0.0
        %572 = vmatprep.subr.mxu0 0.0
        %573 = vmatpush1.msra.mxu0 0.0
        %574 = vmatprep.subr.mxu0 0.0
        %575 = vmatpush1.msra.mxu0 %v540
        %576 = vmatprep.subr.mxu0 0.0
        %577 = vmatpush2.msra.mxu0 0.0
        %578 = vmatprep.subr.mxu0 0.0
        %579 = vmatpush2.msra.mxu0 0.0
        %580 = vmatprep.subr.mxu0 0.0
        %581 = vmatpush2.msra.mxu0 0.0
        %582 = vmatprep.subr.mxu0 0.0
        %583 = vmatpush2.msra.mxu0 0.0
        %584 = vmatprep.subr.mxu0 0.0
        %585 = vmatpush2.msra.mxu0 0.0
        %586 = vmatprep.subr.mxu0 0.0
        %587 = vmatpush2.msra.mxu0 0.0
        %588 = vmatprep.subr.mxu0 0.0
        %589 = vmatpush2.msra.mxu0 0.0
        %590 = vmatprep.subr.mxu0 0.0
        %591 = vmatpush2.msra.mxu0 0.0
        %592 = vmatprep.subr.mxu0 0.0
        %593 = vmatpush2.msra.mxu0 0.0
        %594 = vmatprep.subr.mxu0 0.0
        %595 = vmatpush2.msra.mxu0 0.0
        %596 = vmatprep.subr.mxu0 0.0
        %597 = vmatpush2.msra.mxu0 0.0
        %598 = vmatprep.subr.mxu0 0.0
        %599 = vmatpush2.msra.mxu0 0.0
        %600 = vmatprep.subr.mxu0 0.0
        %601 = vmatpush2.msra.mxu0 0.0
        %602 = vmatprep.subr.mxu0 0.0
        %603 = vmatpush2.msra.mxu0 0.0
        %604 = vmatprep.subr.mxu0 0.0
        %605 = vmatpush2.msra.mxu0 0.0
        %606 = vmatprep.subr.mxu0 0.0
        %607 = vmatpush2.msra.mxu0 0.0
        %608 = vmatprep.mubr.f32.mxu0 0.0
        %609 = vmatmul.mubr.f32.gmra.mxu0 %v542
        %v610 = vpop.f32.mrf.mxu0
        %v611 = vadd.f32 0.0, %v610
        %v612 = vpop.f32.mrf.mxu0
        %613 = vdwg.mxu0
        %v614 = vrcp.pop %v539
        %v615 = vmul.f32 %v611, %v614
        %616 = vst.msk [vmem:[%s254] sm:$0xff] %vm289, %v615
        %s617 = sand.u32 %s146, 1
        %s618 = scalar_lea.sflag [#allocation3], %s617
        %s619 = sand.u32 %s146, 1
        %s620 = smul.addr %s619, 8
        %s621 = scalar_lea.vmem [#allocation2], %s620
        // Predicated region
        $region37: #{dot_attention_v4.1} parent=35 // pred_check
          %p622 = pneg %p156
        $region38: #{dot_attention_v4.1} parent=35 // pred_check_branch
          %624 = sbr.rel (%p622) target = $region40
        $region39: #{dot_attention_v4.1} parent=35 // pred_region
          %s626 = ssub.s32 128, 128
          %627 = vsyncadd %s618, %s626
          %s628 = sadd.s32 %s22, %s23
          %s629 = smul.addr %s628, 128
          %s630 = scalar_lea.hbm %s4, %s629
          %s632 = sshll.u32 %s621, 4
          %s633 = int_to_ptr.vmem [resolvable:$true] %s632
          %635 = dma.vmem_to_hbm [thread:$0]  %s633, 128, %s630, %s618
        $region40: #{dot_attention_v4.1} parent=35 // pred_fallthru
          _
      $region36: #{dot_attention_v4.1} parent=5 // pred_fallthru
        _
      %p636 = scmp.le.s32.totalorder 2, %s13
      // Predicated region
      $region41: #{dot_attention_v4.1} parent=5 // pred_check
        %p637 = pneg %p636
      $region42: #{dot_attention_v4.1} parent=5 // pred_check_branch
        %639 = sbr.rel (%p637) target = $region44
      $region43: #{dot_attention_v4.1} parent=5 // pred_region
        %s640 = ssub.s32 %s13, 2
        // Predicated region
        $region45: #{dot_attention_v4.1} parent=43 // pred_check
          %p641 = pneg %p162
        $region46: #{dot_attention_v4.1} parent=43 // pred_check_branch
          %643 = sbr.rel (%p641) target = $region48
        $region47: #{dot_attention_v4.1} parent=43 // pred_region
          %s644 = sand.u32 %s147, 1
          %s645 = scalar_lea.sflag [#allocation3], %s644
          %s646 = sand.u32 %s147, 1
          %s647 = smul.addr %s646, 8
          %s648 = scalar_lea.vmem [#allocation2], %s647
          %649 = dma.done %s645, 128
        $region48: #{dot_attention_v4.1} parent=43 // pred_fallthru
          _
      $region44: #{dot_attention_v4.1} parent=5 // pred_fallthru
        _
    $region6: #{dot_attention_v4.1} parent=1 // loop_footer
      %s17 = sadd.s32 1, %s13
    $region7: #{dot_attention_v4.1} parent=1 // loop_footer_branch
      %12 = sbr.rel target = $region3
    $region8: #{dot_attention_v4.1} parent=1 // loop_exit
      _
    %650 = vsyncpa [#allocation3], 1
    %s651 = scalar_lea.sflag [#allocation3], 1
    %652 = vsyncpa %s651, 1

</llo_original>
